<compile_context>
chip_gen: v6e
topology: v6e:2x2x1
jax: 0.10.0
libtpu: 0.0.40
codegen_flags: <defaults>
</compile_context>

<pallas_src>
import functools

import jax
import jax.numpy as jnp
from jax.experimental import pallas as pl
from jax.experimental.pallas import tpu as pltpu

_LN_EPS = 1e-5


def _layernorm(y, w, b, inv_d, mask):
    """LayerNorm over the true (C*W) lanes of a lane-padded (rows, Dp) tile."""
    m = jnp.sum(y * mask, axis=-1, keepdims=True) * inv_d
    c = (y - m) * mask                      # padded lanes stay exactly zero
    v = jnp.sum(c * c, axis=-1, keepdims=True) * inv_d
    return c * jax.lax.rsqrt(v + _LN_EPS) * w + b


def _tds_kernel(left, d_true, body_ref, halo_ref, cw_ref, w1_ref, w2_ref,
                vec_ref, o_ref):
    # body_ref: (Bblk, Tt, Dp) bf16   halo_ref: (Bblk, Hb, Dp) bf16
    # cw_ref:   (K, Dp, Dp)    bf16   w1/w2:    (Dp, Dp)       bf16
    # vec_ref:  (8, Dp) f32 packed [conv_b, ln1w, ln1b, b1, b2, ln2w, ln2b, mask]
    bblk, t_out, dp = o_ref.shape
    k_taps = cw_ref.shape[0]
    rows = bblk * t_out

    # Stitch body tile + its (K-1)-row time halo into one window buffer (bf16).
    xin = jnp.concatenate([body_ref[...], halo_ref[...]], axis=1)

    vecs = vec_ref[...]
    conv_b = vecs[0:1, :]
    ln1w, ln1b = vecs[1:2, :], vecs[2:3, :]
    b1, b2 = vecs[3:4, :], vecs[4:5, :]
    ln2w, ln2b = vecs[5:6, :], vecs[6:7, :]
    mask = vecs[7:8, :]
    inv_d = 1.0 / d_true

    # --- conv block: K accumulated matmuls over shifted time windows --------
    conv = jnp.dot(xin[:, 0:t_out, :].reshape(rows, dp), cw_ref[0],
                   preferred_element_type=jnp.float32)
    for k in range(1, k_taps):
        win = xin[:, k:k + t_out, :].reshape(rows, dp)
        conv = conv + jnp.dot(win, cw_ref[k],
                              preferred_element_type=jnp.float32)
    conv = conv + conv_b

    # Residual = the un-padded input rows of this tile.
    xres = xin[:, left:left + t_out, :].reshape(rows, dp).astype(jnp.float32)
    y = jnp.maximum(conv, 0.0) + xres

    # --- conv LayerNorm over (C, W) ------------------------------------------
    y = _layernorm(y, ln1w, ln1b, inv_d, mask)

    # --- linear block: Linear -> ReLU -> Linear, + residual -------------------
    h = jnp.dot(y.astype(jnp.bfloat16), w1_ref[...],
                preferred_element_type=jnp.float32) + b1
    h = jnp.maximum(h, 0.0)
    z = jnp.dot(h.astype(jnp.bfloat16), w2_ref[...],
                preferred_element_type=jnp.float32) + b2
    z = z + y

    # --- linear LayerNorm over (C, W) -----------------------------------------
    z = _layernorm(z, ln2w, ln2b, inv_d, mask)
    o_ref[...] = z.reshape(bblk, t_out, dp).astype(o_ref.dtype)


def _pick_tiles(batch, time, target_rows=512):
    """Pick (batch_block, time_tile): time tile a multiple of 8 dividing `time`
    (already rounded to 8), rows/step near `target_rows`, and >= 2 grid steps
    whenever the problem allows (v7x megacore)."""
    t_opts = [t for t in range(8, time + 1, 8) if time % t == 0]
    b_opts = [b for b in range(1, batch + 1) if batch % b == 0]

    def score(bt):
        bb, tt = bt
        rows = bb * tt
        steps = (batch // bb) * (time // tt)
        return (steps >= 2, rows <= target_rows,
                rows if rows <= target_rows else -rows)

    return max(((bb, tt) for tt in t_opts for bb in b_opts), key=score)


@functools.partial(jax.jit, static_argnums=(2, 3))
def tds_block_forward(x, params, kernel_size, right_padding):
    """x: (B, channels, width, time) -> (B, channels, width, time)."""
    B, C, W, T = x.shape
    D = C * W
    K = kernel_size
    left = K - 1 - right_padding
    assert left >= 0 and right_padding >= 0
    f32, bf16 = jnp.float32, jnp.bfloat16

    Dp = ((D + 127) // 128) * 128            # lane-dense last dimension
    Hb = max(8, ((K - 1 + 7) // 8) * 8)      # halo rows, sublane-aligned
    Tp = ((T + 7) // 8) * 8                  # time rounded to sublane tile
    bblk, Tt = _pick_tiles(B, Tp)
    nB, nT = B // bblk, Tp // Tt

    def pad_row(v):                          # (..) -> (1, Dp) zero-padded lanes
        v = v.astype(f32).reshape(1, D)
        return jnp.pad(v, ((0, 0), (0, Dp - D)))

    def pad_mat(m):                          # (D, D) -> (Dp, Dp) zero-padded
        return jnp.pad(m.astype(f32), ((0, Dp - D), (0, Dp - D)))

    # ---- parameter setup (done once under jit) ----
    # Per-tap conv matrix M_k[ci*W+w, co*W+w] = conv_w[co, ci, 0, k], stacked
    # (K, Dp, Dp) and applied as K accumulated matmuls (no lane concatenate).
    conv_w = params["conv_w"].astype(f32)
    eye_w = jnp.eye(W, dtype=f32)
    cw = jnp.stack([jnp.kron(conv_w[:, :, 0, k].T, eye_w) for k in range(K)], 0)
    cw = jnp.pad(cw, ((0, 0), (0, Dp - D), (0, Dp - D))).astype(bf16)

    w1t = pad_mat(params["w1"].T).astype(bf16)
    w2t = pad_mat(params["w2"].T).astype(bf16)

    lane_mask = (jnp.arange(Dp) < D).astype(f32).reshape(1, Dp)
    vecs = jnp.concatenate([
        pad_row(jnp.repeat(params["conv_b"].astype(f32), W)),
        pad_row(params["ln1_w"]), pad_row(params["ln1_b"]),
        pad_row(params["b1"]), pad_row(params["b2"]),
        pad_row(params["ln2_w"]), pad_row(params["ln2_b"]),
        lane_mask], axis=0)                                      # (8, Dp) f32

    # ---- input layout: (B,C,W,T) -> (B, Tp+Hb, Dp) bf16; one pad covers the
    # conv time halo, the time round-up and the lane padding ----
    xk = jnp.transpose(x.astype(f32), (0, 3, 1, 2)).reshape(B, T, D)
    xk = jnp.pad(xk, ((0, 0), (left, Tp + Hb - T - left), (0, Dp - D)))
    xk = xk.astype(bf16)

    # Halo windows: the first Hb padded rows following each time tile, gathered
    # into a dedicated (B, nT*Hb, Dp) array so both input specs stay Blocked.
    halo_idx = ((jnp.arange(nT) + 1) * Tt)[:, None] + jnp.arange(Hb)[None, :]
    xh = jnp.take(xk, halo_idx.reshape(-1), axis=1)

    # ---- VMEM budget from the actual per-step footprint (double-buffered
    # tiles + once-DMA'd weights + in-kernel temporaries), floored at 32 MiB ---
    rows = bblk * Tt
    tiles = bblk * Tt * Dp * 2 + bblk * Hb * Dp * 2 + bblk * Tt * Dp * 4
    weights = (K + 2) * Dp * Dp * 2 + 8 * Dp * 4
    temps = bblk * (Tt + Hb) * Dp * 2 + 6 * rows * Dp * 4
    vmem_limit = int(min(max(2 * (2 * (tiles + weights) + temps), 32 * 2**20),
                         100 * 2**20))

    kernel = functools.partial(_tds_kernel, left, D)
    const3 = lambda bi, ti: (0, 0, 0)
    const2 = lambda bi, ti: (0, 0)

    out = pl.pallas_call(
        kernel,
        out_shape=jax.ShapeDtypeStruct((B, Tp, Dp), f32),
        grid=(nB, nT),
        in_specs=[
            pl.BlockSpec((bblk, Tt, Dp), lambda bi, ti: (bi, ti, 0)),  # body
            pl.BlockSpec((bblk, Hb, Dp), lambda bi, ti: (bi, ti, 0)),  # halo
            pl.BlockSpec((K, Dp, Dp), const3),                         # conv W
            pl.BlockSpec((Dp, Dp), const2),                            # W1^T
            pl.BlockSpec((Dp, Dp), const2),                            # W2^T
            pl.BlockSpec((8, Dp), const2),                             # vectors
        ],
        out_specs=pl.BlockSpec((bblk, Tt, Dp), lambda bi, ti: (bi, ti, 0)),
        compiler_params=pltpu.CompilerParams(
            dimension_semantics=("parallel", "parallel"),
            vmem_limit_bytes=vmem_limit),
    )(xk, xh, cw, w1t, w2t, vecs)

    out = out[:, :T, :D].reshape(B, T, C, W)
    return jnp.transpose(out, (0, 2, 3, 1))                       # (B, C, W, T)


def tds_block_reference(x, params, kernel_size, right_padding):
    """Plain-JAX reference mirroring the PyTorch module (eval mode)."""
    B, C, W, T = x.shape
    D = C * W
    K = kernel_size
    left = K - 1 - right_padding
    f32 = jnp.float32
    x = x.astype(f32)
    xp = jnp.pad(x, ((0, 0), (0, 0), (0, 0), (left, right_padding)))
    wgt = params["conv_w"].astype(f32)[:, :, 0, :]               # (Co, Ci, K)
    conv = jnp.zeros((B, C, W, T), f32)
    for k in range(K):
        conv = conv + jnp.einsum("oi,biwt->bowt", wgt[:, :, k],
                                 xp[:, :, :, k:k + T],
                                 precision=jax.lax.Precision.HIGHEST)
    conv = conv + params["conv_b"].astype(f32)[None, :, None, None]
    out = jnp.maximum(conv, 0.0) + x
    out = jnp.transpose(out, (0, 3, 1, 2))                       # (B, T, C, W)

    def ln(y, w, b):
        m = jnp.mean(y, axis=(-2, -1), keepdims=True)
        v = jnp.mean((y - m) ** 2, axis=(-2, -1), keepdims=True)
        return (y - m) / jnp.sqrt(v + _LN_EPS) * w + b

    out = ln(out, params["ln1_w"].astype(f32), params["ln1_b"].astype(f32))
    yf = out.reshape(B, T, D)
    hp = jax.lax.Precision.HIGHEST
    h = jnp.maximum(jnp.dot(yf, params["w1"].astype(f32).T, precision=hp)
                    + params["b1"].astype(f32), 0.0)
    z = jnp.dot(h, params["w2"].astype(f32).T, precision=hp) + params["b2"].astype(f32)
    z = (z + yf).reshape(B, T, C, W)
    z = ln(z, params["ln2_w"].astype(f32), params["ln2_b"].astype(f32))
    return jnp.transpose(z, (0, 2, 3, 1))


if __name__ == "__main__":
    B, C, W, T = 2, 4, 8, 16          # batch, channels, width, time
    K, right_padding = 3, 1
    D = C * W

    key = jax.random.PRNGKey(0)
    keys = jax.random.split(key, 11)
    x = jax.random.normal(keys[0], (B, C, W, T), jnp.float32)
    params = dict(
        conv_w=0.1 * jax.random.normal(keys[1], (C, C, 1, K), jnp.float32),
        conv_b=0.1 * jax.random.normal(keys[2], (C,), jnp.float32),
        w1=0.1 * jax.random.normal(keys[3], (D, D), jnp.float32),
        b1=0.1 * jax.random.normal(keys[4], (D,), jnp.float32),
        w2=0.1 * jax.random.normal(keys[5], (D, D), jnp.float32),
        b2=0.1 * jax.random.normal(keys[6], (D,), jnp.float32),
        ln1_w=1.0 + 0.1 * jax.random.normal(keys[7], (C, W), jnp.float32),
        ln1_b=0.1 * jax.random.normal(keys[8], (C, W), jnp.float32),
        ln2_w=1.0 + 0.1 * jax.random.normal(keys[9], (C, W), jnp.float32),
        ln2_b=0.1 * jax.random.normal(keys[10], (C, W), jnp.float32),
    )

    out = tds_block_forward(x, params, K, right_padding)
    out = jax.block_until_ready(out)
    assert out.shape == (B, C, W, T), out.shape

    ref = jax.block_until_ready(tds_block_reference(x, params, K, right_padding))
    # bf16 HBM input + bf16 MXU operands (f32 accumulation) vs an f32
    # HIGHEST-precision reference => slightly loosened tolerance.
    assert jnp.allclose(out, ref, atol=2.5e-2, rtol=2.5e-2), float(
        jnp.max(jnp.abs(out - ref)))

    print("KERNEL_OK")
</pallas_src>

<mosaic_0001>
module attributes {stable_mosaic.version = 11 : i64} {
  func.func @_tds_kernel(%arg0: i32, %arg1: i32, %arg2: memref<2x8x128xbf16, #tpu.memory_space<vmem>>, %arg3: memref<2x8x128xbf16, #tpu.memory_space<vmem>>, %arg4: memref<3x128x128xbf16, #tpu.memory_space<vmem>>, %arg5: memref<128x128xbf16, #tpu.memory_space<vmem>>, %arg6: memref<128x128xbf16, #tpu.memory_space<vmem>>, %arg7: memref<8x128xf32, #tpu.memory_space<vmem>>, %arg8: memref<2x8x128xf32, #tpu.memory_space<vmem>>) attributes {dimension_semantics = [#tpu.dimension_semantics<parallel>, #tpu.dimension_semantics<parallel>], iteration_bounds = array<i64: 1, 2>, scalar_prefetch = 0 : i64, scratch_operands = 0 : i64, tpu.core_type = #tpu.core_type<tc>, window_params = [{transform_indices = @transform_0, window_bounds = array<i64: 2, 8, 128>}, {transform_indices = @transform_1, window_bounds = array<i64: 2, 8, 128>}, {pipeline_mode = #tpu.pipeline_mode<synchronous>, transform_indices = @transform_2, window_bounds = array<i64: 3, 128, 128>}, {pipeline_mode = #tpu.pipeline_mode<synchronous>, transform_indices = @transform_3, window_bounds = array<i64: 128, 128>}, {pipeline_mode = #tpu.pipeline_mode<synchronous>, transform_indices = @transform_4, window_bounds = array<i64: 128, 128>}, {pipeline_mode = #tpu.pipeline_mode<synchronous>, transform_indices = @transform_5, window_bounds = array<i64: 8, 128>}, {transform_indices = @transform_6, window_bounds = array<i64: 2, 8, 128>}]} {
    %c0 = arith.constant 0 : index
    %c0_0 = arith.constant 0 : index
    %c0_1 = arith.constant 0 : index
    %0 = vector.load %arg2[%c0, %c0_0, %c0_1] : memref<2x8x128xbf16, #tpu.memory_space<vmem>>, vector<2x8x128xbf16>
    %c0_2 = arith.constant 0 : index
    %c0_3 = arith.constant 0 : index
    %c0_4 = arith.constant 0 : index
    %1 = vector.load %arg3[%c0_2, %c0_3, %c0_4] : memref<2x8x128xbf16, #tpu.memory_space<vmem>>, vector<2x8x128xbf16>
    %2 = tpu.concatenate %0, %1 in 1 : vector<2x8x128xbf16>, vector<2x8x128xbf16> -> vector<2x16x128xbf16>
    %c0_5 = arith.constant 0 : index
    %c0_6 = arith.constant 0 : index
    %3 = vector.load %arg7[%c0_5, %c0_6] : memref<8x128xf32, #tpu.memory_space<vmem>>, vector<8x128xf32>
    %4 = vector.extract_strided_slice %3 {offsets = [0, 0], sizes = [1, 128], strides = [1, 1]} : vector<8x128xf32> to vector<1x128xf32>
    %5 = vector.extract_strided_slice %3 {offsets = [1, 0], sizes = [1, 128], strides = [1, 1]} : vector<8x128xf32> to vector<1x128xf32>
    %6 = vector.extract_strided_slice %3 {offsets = [2, 0], sizes = [1, 128], strides = [1, 1]} : vector<8x128xf32> to vector<1x128xf32>
    %7 = vector.extract_strided_slice %3 {offsets = [3, 0], sizes = [1, 128], strides = [1, 1]} : vector<8x128xf32> to vector<1x128xf32>
    %8 = vector.extract_strided_slice %3 {offsets = [4, 0], sizes = [1, 128], strides = [1, 1]} : vector<8x128xf32> to vector<1x128xf32>
    %9 = vector.extract_strided_slice %3 {offsets = [5, 0], sizes = [1, 128], strides = [1, 1]} : vector<8x128xf32> to vector<1x128xf32>
    %10 = vector.extract_strided_slice %3 {offsets = [6, 0], sizes = [1, 128], strides = [1, 1]} : vector<8x128xf32> to vector<1x128xf32>
    %11 = vector.extract_strided_slice %3 {offsets = [7, 0], sizes = [1, 128], strides = [1, 1]} : vector<8x128xf32> to vector<1x128xf32>
    %12 = vector.extract_strided_slice %2 {offsets = [0, 0, 0], sizes = [2, 8, 128], strides = [1, 1, 1]} : vector<2x16x128xbf16> to vector<2x8x128xbf16>
    %13 = vector.shape_cast %12 : vector<2x8x128xbf16> to vector<16x128xbf16>
    %c0_7 = arith.constant 0 : index
    %c0_8 = arith.constant 0 : index
    %c0_9 = arith.constant 0 : index
    %14 = vector.load %arg4[%c0_7, %c0_8, %c0_9] : memref<3x128x128xbf16, #tpu.memory_space<vmem>>, vector<1x128x128xbf16>
    %15 = vector.shape_cast %14 : vector<1x128x128xbf16> to vector<128x128xbf16>
    %cst = arith.constant dense<0.000000e+00> : vector<16x128xf32>
    %16 = tpu.matmul %13, %15, %cst {dimension_numbers = #tpu.dot_dimension_numbers<[1], [0], [0], [1], [0, 0, 1, 1], [], []>} : vector<16x128xbf16>, vector<128x128xbf16>, vector<16x128xf32> -> vector<16x128xf32>
    %17 = vector.extract_strided_slice %2 {offsets = [0, 1, 0], sizes = [2, 8, 128], strides = [1, 1, 1]} : vector<2x16x128xbf16> to vector<2x8x128xbf16>
    %18 = vector.shape_cast %17 : vector<2x8x128xbf16> to vector<16x128xbf16>
    %c1 = arith.constant 1 : index
    %c0_10 = arith.constant 0 : index
    %c0_11 = arith.constant 0 : index
    %19 = vector.load %arg4[%c1, %c0_10, %c0_11] : memref<3x128x128xbf16, #tpu.memory_space<vmem>>, vector<1x128x128xbf16>
    %20 = vector.shape_cast %19 : vector<1x128x128xbf16> to vector<128x128xbf16>
    %cst_12 = arith.constant dense<0.000000e+00> : vector<16x128xf32>
    %21 = tpu.matmul %18, %20, %cst_12 {dimension_numbers = #tpu.dot_dimension_numbers<[1], [0], [0], [1], [0, 0, 1, 1], [], []>} : vector<16x128xbf16>, vector<128x128xbf16>, vector<16x128xf32> -> vector<16x128xf32>
    %22 = arith.addf %16, %21 : vector<16x128xf32>
    %23 = vector.extract_strided_slice %2 {offsets = [0, 2, 0], sizes = [2, 8, 128], strides = [1, 1, 1]} : vector<2x16x128xbf16> to vector<2x8x128xbf16>
    %24 = vector.shape_cast %23 : vector<2x8x128xbf16> to vector<16x128xbf16>
    %c2 = arith.constant 2 : index
    %c0_13 = arith.constant 0 : index
    %c0_14 = arith.constant 0 : index
    %25 = vector.load %arg4[%c2, %c0_13, %c0_14] : memref<3x128x128xbf16, #tpu.memory_space<vmem>>, vector<1x128x128xbf16>
    %26 = vector.shape_cast %25 : vector<1x128x128xbf16> to vector<128x128xbf16>
    %cst_15 = arith.constant dense<0.000000e+00> : vector<16x128xf32>
    %27 = tpu.matmul %24, %26, %cst_15 {dimension_numbers = #tpu.dot_dimension_numbers<[1], [0], [0], [1], [0, 0, 1, 1], [], []>} : vector<16x128xbf16>, vector<128x128xbf16>, vector<16x128xf32> -> vector<16x128xf32>
    %28 = arith.addf %22, %27 : vector<16x128xf32>
    %29 = vector.broadcast %4 : vector<1x128xf32> to vector<16x128xf32>
    %30 = arith.addf %28, %29 : vector<16x128xf32>
    %31 = vector.extract_strided_slice %2 {offsets = [0, 1, 0], sizes = [2, 8, 128], strides = [1, 1, 1]} : vector<2x16x128xbf16> to vector<2x8x128xbf16>
    %32 = vector.shape_cast %31 : vector<2x8x128xbf16> to vector<16x128xbf16>
    %33 = arith.extf %32 : vector<16x128xbf16> to vector<16x128xf32>
    %cst_16 = arith.constant 0.000000e+00 : f32
    %34 = vector.broadcast %cst_16 : f32 to vector<16x128xf32>
    %35 = arith.maximumf %30, %34 : vector<16x128xf32>
    %36 = arith.addf %35, %33 : vector<16x128xf32>
    %37 = vector.broadcast %11 : vector<1x128xf32> to vector<16x128xf32>
    %38 = arith.mulf %36, %37 : vector<16x128xf32>
    %cst_17 = arith.constant dense<0.000000e+00> : vector<16xf32>
    %39 = vector.multi_reduction <add>, %38, %cst_17 [1] : vector<16x128xf32> to vector<16xf32>
    %40 = vector.shape_cast %39 : vector<16xf32> to vector<16x1xf32>
    %cst_18 = arith.constant 3.125000e-02 : f32
    %41 = vector.broadcast %cst_18 : f32 to vector<16x1xf32>
    %42 = arith.mulf %40, %41 : vector<16x1xf32>
    %43 = vector.broadcast %42 : vector<16x1xf32> to vector<16x128xf32>
    %44 = arith.subf %36, %43 : vector<16x128xf32>
    %45 = vector.broadcast %11 : vector<1x128xf32> to vector<16x128xf32>
    %46 = arith.mulf %44, %45 : vector<16x128xf32>
    %47 = arith.mulf %46, %46 : vector<16x128xf32>
    %cst_19 = arith.constant dense<0.000000e+00> : vector<16xf32>
    %48 = vector.multi_reduction <add>, %47, %cst_19 [1] : vector<16x128xf32> to vector<16xf32>
    %49 = vector.shape_cast %48 : vector<16xf32> to vector<16x1xf32>
    %cst_20 = arith.constant 3.125000e-02 : f32
    %50 = vector.broadcast %cst_20 : f32 to vector<16x1xf32>
    %51 = arith.mulf %49, %50 : vector<16x1xf32>
    %cst_21 = arith.constant 9.99999974E-6 : f32
    %52 = vector.broadcast %cst_21 : f32 to vector<16x1xf32>
    %53 = arith.addf %51, %52 : vector<16x1xf32>
    %54 = math.rsqrt %53 : vector<16x1xf32>
    %55 = vector.broadcast %54 : vector<16x1xf32> to vector<16x128xf32>
    %56 = arith.mulf %46, %55 : vector<16x128xf32>
    %57 = vector.broadcast %5 : vector<1x128xf32> to vector<16x128xf32>
    %58 = arith.mulf %56, %57 : vector<16x128xf32>
    %59 = vector.broadcast %6 : vector<1x128xf32> to vector<16x128xf32>
    %60 = arith.addf %58, %59 : vector<16x128xf32>
    %61 = arith.truncf %60 : vector<16x128xf32> to vector<16x128xbf16>
    %c0_22 = arith.constant 0 : index
    %c0_23 = arith.constant 0 : index
    %62 = vector.load %arg5[%c0_22, %c0_23] : memref<128x128xbf16, #tpu.memory_space<vmem>>, vector<128x128xbf16>
    %cst_24 = arith.constant dense<0.000000e+00> : vector<16x128xf32>
    %63 = tpu.matmul %61, %62, %cst_24 {dimension_numbers = #tpu.dot_dimension_numbers<[1], [0], [0], [1], [0, 0, 1, 1], [], []>} : vector<16x128xbf16>, vector<128x128xbf16>, vector<16x128xf32> -> vector<16x128xf32>
    %64 = vector.broadcast %7 : vector<1x128xf32> to vector<16x128xf32>
    %65 = arith.addf %63, %64 : vector<16x128xf32>
    %cst_25 = arith.constant 0.000000e+00 : f32
    %66 = vector.broadcast %cst_25 : f32 to vector<16x128xf32>
    %67 = arith.maximumf %65, %66 : vector<16x128xf32>
    %68 = arith.truncf %67 : vector<16x128xf32> to vector<16x128xbf16>
    %c0_26 = arith.constant 0 : index
    %c0_27 = arith.constant 0 : index
    %69 = vector.load %arg6[%c0_26, %c0_27] : memref<128x128xbf16, #tpu.memory_space<vmem>>, vector<128x128xbf16>
    %cst_28 = arith.constant dense<0.000000e+00> : vector<16x128xf32>
    %70 = tpu.matmul %68, %69, %cst_28 {dimension_numbers = #tpu.dot_dimension_numbers<[1], [0], [0], [1], [0, 0, 1, 1], [], []>} : vector<16x128xbf16>, vector<128x128xbf16>, vector<16x128xf32> -> vector<16x128xf32>
    %71 = vector.broadcast %8 : vector<1x128xf32> to vector<16x128xf32>
    %72 = arith.addf %70, %71 : vector<16x128xf32>
    %73 = arith.addf %72, %60 : vector<16x128xf32>
    %74 = vector.broadcast %11 : vector<1x128xf32> to vector<16x128xf32>
    %75 = arith.mulf %73, %74 : vector<16x128xf32>
    %cst_29 = arith.constant dense<0.000000e+00> : vector<16xf32>
    %76 = vector.multi_reduction <add>, %75, %cst_29 [1] : vector<16x128xf32> to vector<16xf32>
    %77 = vector.shape_cast %76 : vector<16xf32> to vector<16x1xf32>
    %cst_30 = arith.constant 3.125000e-02 : f32
    %78 = vector.broadcast %cst_30 : f32 to vector<16x1xf32>
    %79 = arith.mulf %77, %78 : vector<16x1xf32>
    %80 = vector.broadcast %79 : vector<16x1xf32> to vector<16x128xf32>
    %81 = arith.subf %73, %80 : vector<16x128xf32>
    %82 = vector.broadcast %11 : vector<1x128xf32> to vector<16x128xf32>
    %83 = arith.mulf %81, %82 : vector<16x128xf32>
    %84 = arith.mulf %83, %83 : vector<16x128xf32>
    %cst_31 = arith.constant dense<0.000000e+00> : vector<16xf32>
    %85 = vector.multi_reduction <add>, %84, %cst_31 [1] : vector<16x128xf32> to vector<16xf32>
    %86 = vector.shape_cast %85 : vector<16xf32> to vector<16x1xf32>
    %cst_32 = arith.constant 3.125000e-02 : f32
    %87 = vector.broadcast %cst_32 : f32 to vector<16x1xf32>
    %88 = arith.mulf %86, %87 : vector<16x1xf32>
    %cst_33 = arith.constant 9.99999974E-6 : f32
    %89 = vector.broadcast %cst_33 : f32 to vector<16x1xf32>
    %90 = arith.addf %88, %89 : vector<16x1xf32>
    %91 = math.rsqrt %90 : vector<16x1xf32>
    %92 = vector.broadcast %91 : vector<16x1xf32> to vector<16x128xf32>
    %93 = arith.mulf %83, %92 : vector<16x128xf32>
    %94 = vector.broadcast %9 : vector<1x128xf32> to vector<16x128xf32>
    %95 = arith.mulf %93, %94 : vector<16x128xf32>
    %96 = vector.broadcast %10 : vector<1x128xf32> to vector<16x128xf32>
    %97 = arith.addf %95, %96 : vector<16x128xf32>
    %98 = vector.shape_cast %97 : vector<16x128xf32> to vector<2x8x128xf32>
    %c0_34 = arith.constant 0 : index
    %c0_35 = arith.constant 0 : index
    %c0_36 = arith.constant 0 : index
    %99 = vector.load %arg8[%c0_34, %c0_35, %c0_36] : memref<2x8x128xf32, #tpu.memory_space<vmem>>, vector<2x8x128xf32>
    tpu.vector_store %arg8[%c0_34, %c0_35, %c0_36], %98 {strides = array<i32>} : memref<2x8x128xf32, #tpu.memory_space<vmem>>, vector<2x8x128xf32>,
    return
  }
  func.func @transform_0(%arg0: i32, %arg1: i32) -> (i32, i32, i32) {
    %c0_i32 = arith.constant 0 : i32
    %c0_i32_0 = arith.constant 0 : i32
    return %arg0, %arg1, %c0_i32 : i32, i32, i32
  }
  func.func @transform_1(%arg0: i32, %arg1: i32) -> (i32, i32, i32) {
    %c0_i32 = arith.constant 0 : i32
    %c0_i32_0 = arith.constant 0 : i32
    return %arg0, %arg1, %c0_i32 : i32, i32, i32
  }
  func.func @transform_2(%arg0: i32, %arg1: i32) -> (i32, i32, i32) {
    %c0_i32 = arith.constant 0 : i32
    %c0_i32_0 = arith.constant 0 : i32
    %c0_i32_1 = arith.constant 0 : i32
    %c0_i32_2 = arith.constant 0 : i32
    return %c0_i32, %c0_i32_0, %c0_i32_1 : i32, i32, i32
  }
  func.func @transform_3(%arg0: i32, %arg1: i32) -> (i32, i32) {
    %c0_i32 = arith.constant 0 : i32
    %c0_i32_0 = arith.constant 0 : i32
    %c0_i32_1 = arith.constant 0 : i32
    return %c0_i32, %c0_i32_0 : i32, i32
  }
  func.func @transform_4(%arg0: i32, %arg1: i32) -> (i32, i32) {
    %c0_i32 = arith.constant 0 : i32
    %c0_i32_0 = arith.constant 0 : i32
    %c0_i32_1 = arith.constant 0 : i32
    return %c0_i32, %c0_i32_0 : i32, i32
  }
  func.func @transform_5(%arg0: i32, %arg1: i32) -> (i32, i32) {
    %c0_i32 = arith.constant 0 : i32
    %c0_i32_0 = arith.constant 0 : i32
    %c0_i32_1 = arith.constant 0 : i32
    return %c0_i32, %c0_i32_0 : i32, i32
  }
  func.func @transform_6(%arg0: i32, %arg1: i32) -> (i32, i32, i32) {
    %c0_i32 = arith.constant 0 : i32
    %c0_i32_0 = arith.constant 0 : i32
    return %arg0, %arg1, %c0_i32 : i32, i32, i32
  }
}

</mosaic_0001>

<llo_original>
// kernel: tds_block_forward.1
$region0: #{tds_block_forward.1}
  #allocation0 [shape = 'u32[]', space=smem, size = 0x4, offset = 0x4, fixed_abs, tag = 'smem constant byte address 0x4 - core index']
  #allocation1 [shape = 'u32[144,128]{1,0:T(1,128)}', space=vmem, size = 0x12000, scoped, tag = 'internal scratch']
  %s0 = inlined_call_operand.vmem [shape: bf16[2,24,128], index: 0, kind: input, shape index: {}]
  %s1 = inlined_call_operand.vmem [shape: bf16[2,16,128], index: 1, kind: input, shape index: {}]
  %s2 = inlined_call_operand.vmem [shape: bf16[3,128,128], index: 2, kind: input, shape index: {}]
  %s3 = inlined_call_operand.vmem [shape: bf16[128,128], index: 3, kind: input, shape index: {}]
  %s4 = inlined_call_operand.vmem [shape: bf16[128,128], index: 4, kind: input, shape index: {}]
  %s5 = inlined_call_operand.vmem [shape: f32[8,128], index: 5, kind: input, shape index: {}]
  %s6 = inlined_call_operand.vmem [shape: f32[2,16,128], index: 6, kind: output, shape index: {}]
  %s7 = sld [smem:[#allocation0]]
  $region173: #{tds_block_forward.1} parent=0
    _
  %s9 = ssub.s32 1, %s7
  %s10 = scalar_select 0, %s9, %s7
  $region1: #{tds_block_forward.1} parent=0
    #allocation2 [shape = 'u8[8192]{0}', space=vmem, size = 0x2000, scoped, tag = 'input window, operand 0']
    #allocation3 [shape = 'u8[8192]{0}', space=vmem, size = 0x2000, scoped, tag = 'input window, operand 1']
    #allocation4 [shape = 'u8[16384]{0}', space=vmem, size = 0x4000, scoped, tag = 'output window, operand 0']
    loop: start=0, step=1, limit=4
    $region2: #{tds_block_forward.1} parent=1 // loop_pre_header
      _
    $region3: #{tds_block_forward.1} parent=1 // loop_header
      %s12 = sphi 0, %s16
      %p13 = scmp.ge.s32.totalorder %s12, 4
      %s19 = sphi 0, %s31
      %s20 = sphi 0, %s27
      %s21 = sphi 0, %s19
      %s22 = sphi 0, %s20
      %s23 = sphi 0, %s21
      %s24 = sphi 0, %s22
      %s36 = sphi 0, %s38
      %s39 = sphi 0, %s36
      %s40 = sphi 0, %s39
      %s56 = sphi 0, %s40
      %s64 = sphi 0, %s66
      %s67 = sphi 0, %s64
      %s68 = sphi 0, %s67
      %s84 = sphi 0, %s68
      %s88 = sphi 0, %s88
      %s90 = sphi 0, %s88
      %s91 = sphi 0, %s90
      %s105 = sphi 0, %s91
      %s109 = sphi 0, %s109
      %s111 = sphi 0, %s109
      %s112 = sphi 0, %s111
      %s126 = sphi 0, %s112
      %s130 = sphi 0, %s130
      %s132 = sphi 0, %s130
      %s133 = sphi 0, %s132
      %s147 = sphi 0, %s133
      %s151 = sphi 0, %s151
      %s153 = sphi 0, %s151
      %s154 = sphi 0, %s153
      %s168 = sphi 0, %s154
      %s176 = sphi 0, %s178
      %s179 = sphi 0, %s176
      %s180 = sphi 0, %s179
      %s196 = sphi 0, %s180
    $region4: #{tds_block_forward.1} parent=1 // loop_header_branch
      %15 = sbr.rel (%p13) target = $region8
    $region5: #{tds_block_forward.1} parent=1 // loop_body
      %s17 = ssub.s32 %s12, 1
      %s18 = ssub.s32 %s12, 2
      %s25 = sadd.s32 1, %s20
      %p26 = scmp.ge.s32.totalorder %s25, 2
      %s27 = scalar_select %p26, 0, %s25
      %s28 = sadd.s32 1, %s19
      %s29 = scalar_select %p26, %s28, %s19
      %p30 = scmp.ge.s32.totalorder %s29, 1
      %s31 = scalar_select %p30, 0, %s29
      %s32 = ssub.s32 %s19, %s31
      %s33 = ssub.s32 %s20, %s27
      %s34 = sor.u32 %s32, %s33
      %p35 = scmp.eq.s32.totalorder %s34, 0
      %s37 = sadd.s32 %s36, 1
      %s38 = scalar_select %p35, %s36, %s37
      %p41 = pneg %p35
      %p42 = scmp.eq.s32.totalorder %s12, 1
      %p43 = por %p41, %p42
      %p44 = scmp.ne.s32.totalorder %s36, %s39
      %p45 = scmp.eq.s32.totalorder %s12, 0
      %p46 = por %p44, %p45
      %p47 = scmp.ne.s32.totalorder %s36, %s39
      %p48 = scmp.eq.s32.totalorder %s17, 1
      %p49 = por %p47, %p48
      %p50 = scmp.ne.s32.totalorder %s39, %s40
      %p51 = scmp.eq.s32.totalorder %s17, 0
      %p52 = por %p50, %p51
      %p53 = scmp.ne.s32.totalorder %s39, %s40
      %p54 = scmp.eq.s32.totalorder %s18, 1
      %p55 = por %p53, %p54
      %p57 = scmp.ne.s32.totalorder %s40, %s56
      %p58 = scmp.eq.s32.totalorder %s18, 0
      %p59 = por %p57, %p58
      %s60 = ssub.s32 %s19, %s31
      %s61 = ssub.s32 %s20, %s27
      %s62 = sor.u32 %s60, %s61
      %p63 = scmp.eq.s32.totalorder %s62, 0
      %s65 = sadd.s32 %s64, 1
      %s66 = scalar_select %p63, %s64, %s65
      %p69 = pneg %p63
      %p70 = scmp.eq.s32.totalorder %s12, 1
      %p71 = por %p69, %p70
      %p72 = scmp.ne.s32.totalorder %s64, %s67
      %p73 = scmp.eq.s32.totalorder %s12, 0
      %p74 = por %p72, %p73
      %p75 = scmp.ne.s32.totalorder %s64, %s67
      %p76 = scmp.eq.s32.totalorder %s17, 1
      %p77 = por %p75, %p76
      %p78 = scmp.ne.s32.totalorder %s67, %s68
      %p79 = scmp.eq.s32.totalorder %s17, 0
      %p80 = por %p78, %p79
      %p81 = scmp.ne.s32.totalorder %s67, %s68
      %p82 = scmp.eq.s32.totalorder %s18, 1
      %p83 = por %p81, %p82
      %p85 = scmp.ne.s32.totalorder %s68, %s84
      %p86 = scmp.eq.s32.totalorder %s18, 0
      %p87 = por %p85, %p86
      %s89 = sadd.s32 %s88, 1
      %p92 = scmp.eq.s32.totalorder %s12, 1
      %p93 = scmp.ne.s32.totalorder %s88, %s90
      %p94 = scmp.eq.s32.totalorder %s12, 0
      %p95 = por %p93, %p94
      %p96 = scmp.ne.s32.totalorder %s88, %s90
      %p97 = scmp.eq.s32.totalorder %s17, 1
      %p98 = por %p96, %p97
      %p99 = scmp.ne.s32.totalorder %s90, %s91
      %p100 = scmp.eq.s32.totalorder %s17, 0
      %p101 = por %p99, %p100
      %p102 = scmp.ne.s32.totalorder %s90, %s91
      %p103 = scmp.eq.s32.totalorder %s18, 1
      %p104 = por %p102, %p103
      %p106 = scmp.ne.s32.totalorder %s91, %s105
      %p107 = scmp.eq.s32.totalorder %s18, 0
      %p108 = por %p106, %p107
      %s110 = sadd.s32 %s109, 1
      %p113 = scmp.eq.s32.totalorder %s12, 1
      %p114 = scmp.ne.s32.totalorder %s109, %s111
      %p115 = scmp.eq.s32.totalorder %s12, 0
      %p116 = por %p114, %p115
      %p117 = scmp.ne.s32.totalorder %s109, %s111
      %p118 = scmp.eq.s32.totalorder %s17, 1
      %p119 = por %p117, %p118
      %p120 = scmp.ne.s32.totalorder %s111, %s112
      %p121 = scmp.eq.s32.totalorder %s17, 0
      %p122 = por %p120, %p121
      %p123 = scmp.ne.s32.totalorder %s111, %s112
      %p124 = scmp.eq.s32.totalorder %s18, 1
      %p125 = por %p123, %p124
      %p127 = scmp.ne.s32.totalorder %s112, %s126
      %p128 = scmp.eq.s32.totalorder %s18, 0
      %p129 = por %p127, %p128
      %s131 = sadd.s32 %s130, 1
      %p134 = scmp.eq.s32.totalorder %s12, 1
      %p135 = scmp.ne.s32.totalorder %s130, %s132
      %p136 = scmp.eq.s32.totalorder %s12, 0
      %p137 = por %p135, %p136
      %p138 = scmp.ne.s32.totalorder %s130, %s132
      %p139 = scmp.eq.s32.totalorder %s17, 1
      %p140 = por %p138, %p139
      %p141 = scmp.ne.s32.totalorder %s132, %s133
      %p142 = scmp.eq.s32.totalorder %s17, 0
      %p143 = por %p141, %p142
      %p144 = scmp.ne.s32.totalorder %s132, %s133
      %p145 = scmp.eq.s32.totalorder %s18, 1
      %p146 = por %p144, %p145
      %p148 = scmp.ne.s32.totalorder %s133, %s147
      %p149 = scmp.eq.s32.totalorder %s18, 0
      %p150 = por %p148, %p149
      %s152 = sadd.s32 %s151, 1
      %p155 = scmp.eq.s32.totalorder %s12, 1
      %p156 = scmp.ne.s32.totalorder %s151, %s153
      %p157 = scmp.eq.s32.totalorder %s12, 0
      %p158 = por %p156, %p157
      %p159 = scmp.ne.s32.totalorder %s151, %s153
      %p160 = scmp.eq.s32.totalorder %s17, 1
      %p161 = por %p159, %p160
      %p162 = scmp.ne.s32.totalorder %s153, %s154
      %p163 = scmp.eq.s32.totalorder %s17, 0
      %p164 = por %p162, %p163
      %p165 = scmp.ne.s32.totalorder %s153, %s154
      %p166 = scmp.eq.s32.totalorder %s18, 1
      %p167 = por %p165, %p166
      %p169 = scmp.ne.s32.totalorder %s154, %s168
      %p170 = scmp.eq.s32.totalorder %s18, 0
      %p171 = por %p169, %p170
      %s172 = ssub.s32 %s19, %s31
      %s173 = ssub.s32 %s20, %s27
      %s174 = sor.u32 %s172, %s173
      %p175 = scmp.eq.s32.totalorder %s174, 0
      %s177 = sadd.s32 %s176, 1
      %s178 = scalar_select %p175, %s176, %s177
      %p181 = pneg %p175
      %p182 = scmp.eq.s32.totalorder %s12, 1
      %p183 = por %p181, %p182
      %p184 = scmp.ne.s32.totalorder %s176, %s179
      %p185 = scmp.eq.s32.totalorder %s12, 0
      %p186 = por %p184, %p185
      %p187 = scmp.ne.s32.totalorder %s176, %s179
      %p188 = scmp.eq.s32.totalorder %s17, 1
      %p189 = por %p187, %p188
      %p190 = scmp.ne.s32.totalorder %s179, %s180
      %p191 = scmp.eq.s32.totalorder %s17, 0
      %p192 = por %p190, %p191
      %p193 = scmp.ne.s32.totalorder %s179, %s180
      %p194 = scmp.eq.s32.totalorder %s18, 1
      %p195 = por %p193, %p194
      %p197 = scmp.ne.s32.totalorder %s180, %s196
      %p198 = scmp.eq.s32.totalorder %s18, 0
      %p199 = por %p197, %p198
      %p200 = scmp.le.s32.totalorder 1, %s12
      %p201 = scmp.lt.s32.totalorder %s12, 3
      %p202 = pnand %p200, %p201
      %p203 = pneg %p202
      // Predicated region
      $region9: #{tds_block_forward.1} parent=5 // pred_check
        _
      $region10: #{tds_block_forward.1} parent=5 // pred_check_branch
        %205 = sbr.rel (%p202) target = $region12
      $region11: #{tds_block_forward.1} parent=5 // pred_region
        %s206 = ssub.s32 %s12, 1
        // Predicated region
        $region13: #{tds_block_forward.1} parent=11 // pred_check
          %p207 = pneg %p101
        $region14: #{tds_block_forward.1} parent=11 // pred_check_branch
          %209 = sbr.rel (%p207) target = $region16
        $region15: #{tds_block_forward.1} parent=11 // pred_region
          _
        $region16: #{tds_block_forward.1} parent=11 // pred_fallthru
          _
        // Predicated region
        $region17: #{tds_block_forward.1} parent=11 // pred_check
          %p210 = pneg %p122
        $region18: #{tds_block_forward.1} parent=11 // pred_check_branch
          %212 = sbr.rel (%p210) target = $region20
        $region19: #{tds_block_forward.1} parent=11 // pred_region
          _
        $region20: #{tds_block_forward.1} parent=11 // pred_fallthru
          _
        // Predicated region
        $region21: #{tds_block_forward.1} parent=11 // pred_check
          %p213 = pneg %p143
        $region22: #{tds_block_forward.1} parent=11 // pred_check_branch
          %215 = sbr.rel (%p213) target = $region24
        $region23: #{tds_block_forward.1} parent=11 // pred_region
          _
        $region24: #{tds_block_forward.1} parent=11 // pred_fallthru
          _
        // Predicated region
        $region25: #{tds_block_forward.1} parent=11 // pred_check
          %p216 = pneg %p164
        $region26: #{tds_block_forward.1} parent=11 // pred_check_branch
          %218 = sbr.rel (%p216) target = $region28
        $region27: #{tds_block_forward.1} parent=11 // pred_region
          _
        $region28: #{tds_block_forward.1} parent=11 // pred_fallthru
          _
      $region12: #{tds_block_forward.1} parent=5 // pred_fallthru
        _
      %p219 = scmp.lt.s32.totalorder %s12, 2
      // Predicated region
      $region29: #{tds_block_forward.1} parent=5 // pred_check
        %p220 = pneg %p219
      $region30: #{tds_block_forward.1} parent=5 // pred_check_branch
        %222 = sbr.rel (%p220) target = $region32
      $region31: #{tds_block_forward.1} parent=5 // pred_region
        // Predicated region
        $region33: #{tds_block_forward.1} parent=31 // pred_check
          %p223 = pneg %p46
        $region34: #{tds_block_forward.1} parent=31 // pred_check_branch
          %225 = sbr.rel (%p223) target = $region36
        $region35: #{tds_block_forward.1} parent=31 // pred_region
          %s226 = sand.u32 %s36, 1
          %s227 = sand.u32 %s36, 1
          %s228 = smul.addr %s227, 8
          %s229 = scalar_lea.vmem [#allocation2], %s228
          %s230 = smul.u32 2, %s19
          %s231 = smul.addr %s230, 3
          %s232 = sadd.s32 %s20, %s231
          %s233 = smul.addr %s232, 4
          %s234 = scalar_lea.vmem %s0, %s233
          // Predicated region
          $region37: #{tds_block_forward.1} parent=35 // pred_check
            _
          $region38: #{tds_block_forward.1} parent=35 // pred_check_branch
            %236 = sbr.rel (0) target = $region40
          $region39: #{tds_block_forward.1} parent=35 // pred_region
            // Predicated region
            $region41: #{tds_block_forward.1} parent=39 // pred_check
              _
            $region42: #{tds_block_forward.1} parent=39 // pred_check_branch
              %238 = sbr.rel target = $region44
            $region43: #{tds_block_forward.1} parent=39 // pred_region
              // Predicated region
              $region56: #{tds_block_forward.1} parent=43 // pred_check
                _
              $region57: #{tds_block_forward.1} parent=43 // pred_check_branch
                %256 = sbr.rel (0) target = $region59
              $region58: #{tds_block_forward.1} parent=43 // pred_region
                loop: start=0, step=1, limit=1
                $region60: #{tds_block_forward.1} parent=58 // loop_pre_header
                  _
                $region61: #{tds_block_forward.1} parent=58 // loop_header
                  %s258 = sphi 0, %s262
                  %p259 = scmp.ge.s32.totalorder %s258, 1
                  %s263 = sphi %s234, %s234
                  %s264 = sphi %s229, %s229
                $region62: #{tds_block_forward.1} parent=58 // loop_header_branch
                  %261 = sbr.rel (%p259) target = $region66
                $region63: #{tds_block_forward.1} parent=58 // loop_body
                  _
                $region64: #{tds_block_forward.1} parent=58 // loop_footer
                  %s262 = sadd.s32 1, %s258
                $region65: #{tds_block_forward.1} parent=58 // loop_footer_branch
                  %257 = sbr.rel target = $region61
                $region66: #{tds_block_forward.1} parent=58 // loop_exit
                  _
                %s266 = ssub.s32 16, 1
                loop: start=0, step=1, limit=1
                $region67: #{tds_block_forward.1} parent=58 // loop_pre_header
                  _
                $region68: #{tds_block_forward.1} parent=58 // loop_header
                  %s268 = sphi 0, %s272
                  %p269 = scmp.ge.s32.totalorder %s268, 1
                  %s273 = sphi %s234, %s234
                  %s274 = sphi %s229, %s229
                $region69: #{tds_block_forward.1} parent=58 // loop_header_branch
                  %271 = sbr.rel (%p269) target = $region73
                $region70: #{tds_block_forward.1} parent=58 // loop_body
                  %v275 = vld [vmem:[%s273] sm:%s266]
                  %276 = vst [vmem:[%s274] sm:%s266] %v275
                  %v277 = vld [vmem:[%s273 + $0xc] sm:%s266]
                  %278 = vst [vmem:[%s274 + $0x4] sm:%s266] %v277
                $region71: #{tds_block_forward.1} parent=58 // loop_footer
                  %s272 = sadd.s32 1, %s268
                $region72: #{tds_block_forward.1} parent=58 // loop_footer_branch
                  %267 = sbr.rel target = $region68
                $region73: #{tds_block_forward.1} parent=58 // loop_exit
                  _
              $region59: #{tds_block_forward.1} parent=43 // pred_fallthru
                _
            $region44: #{tds_block_forward.1} parent=39 // pred_fallthru
              _
            // Predicated region
            $region45: #{tds_block_forward.1} parent=39 // pred_check
              _
            $region46: #{tds_block_forward.1} parent=39 // pred_check_branch
              %240 = sbr.rel (0) target = $region48
            $region47: #{tds_block_forward.1} parent=39 // pred_region
              %s242 = ssub.s32 16, 1
              loop: start=0, step=1, limit=1
              $region49: #{tds_block_forward.1} parent=47 // loop_pre_header
                _
              $region50: #{tds_block_forward.1} parent=47 // loop_header
                %s244 = sphi 0, %s248
                %p245 = scmp.ge.s32.totalorder %s244, 1
                %s249 = sphi %s234, %s234
                %s250 = sphi %s229, %s229
              $region51: #{tds_block_forward.1} parent=47 // loop_header_branch
                %247 = sbr.rel (%p245) target = $region55
              $region52: #{tds_block_forward.1} parent=47 // loop_body
                %v251 = vld [vmem:[%s249] sm:%s242]
                %252 = vst [vmem:[%s250] sm:%s242] %v251
                %v253 = vld [vmem:[%s249 + $0xc] sm:%s242]
                %254 = vst [vmem:[%s250 + $0x4] sm:%s242] %v253
              $region53: #{tds_block_forward.1} parent=47 // loop_footer
                %s248 = sadd.s32 1, %s244
              $region54: #{tds_block_forward.1} parent=47 // loop_footer_branch
                %243 = sbr.rel target = $region50
              $region55: #{tds_block_forward.1} parent=47 // loop_exit
                _
            $region48: #{tds_block_forward.1} parent=39 // pred_fallthru
              _
          $region40: #{tds_block_forward.1} parent=35 // pred_fallthru
            _
          %279 = vnop
        $region36: #{tds_block_forward.1} parent=31 // pred_fallthru
          _
        // Predicated region
        $region74: #{tds_block_forward.1} parent=31 // pred_check
          %p280 = pneg %p74
        $region75: #{tds_block_forward.1} parent=31 // pred_check_branch
          %282 = sbr.rel (%p280) target = $region77
        $region76: #{tds_block_forward.1} parent=31 // pred_region
          %s283 = sand.u32 %s64, 1
          %s284 = sand.u32 %s64, 1
          %s285 = smul.addr %s284, 8
          %s286 = scalar_lea.vmem [#allocation3], %s285
          %s287 = smul.u32 2, %s19
          %s288 = smul.addr %s287, 2
          %s289 = sadd.s32 %s20, %s288
          %s290 = smul.addr %s289, 4
          %s291 = scalar_lea.vmem %s1, %s290
          // Predicated region
          $region78: #{tds_block_forward.1} parent=76 // pred_check
            _
          $region79: #{tds_block_forward.1} parent=76 // pred_check_branch
            %293 = sbr.rel (0) target = $region81
          $region80: #{tds_block_forward.1} parent=76 // pred_region
            // Predicated region
            $region82: #{tds_block_forward.1} parent=80 // pred_check
              _
            $region83: #{tds_block_forward.1} parent=80 // pred_check_branch
              %295 = sbr.rel target = $region85
            $region84: #{tds_block_forward.1} parent=80 // pred_region
              // Predicated region
              $region97: #{tds_block_forward.1} parent=84 // pred_check
                _
              $region98: #{tds_block_forward.1} parent=84 // pred_check_branch
                %313 = sbr.rel (0) target = $region100
              $region99: #{tds_block_forward.1} parent=84 // pred_region
                loop: start=0, step=1, limit=1
                $region101: #{tds_block_forward.1} parent=99 // loop_pre_header
                  _
                $region102: #{tds_block_forward.1} parent=99 // loop_header
                  %s315 = sphi 0, %s319
                  %p316 = scmp.ge.s32.totalorder %s315, 1
                  %s320 = sphi %s291, %s291
                  %s321 = sphi %s286, %s286
                $region103: #{tds_block_forward.1} parent=99 // loop_header_branch
                  %318 = sbr.rel (%p316) target = $region107
                $region104: #{tds_block_forward.1} parent=99 // loop_body
                  _
                $region105: #{tds_block_forward.1} parent=99 // loop_footer
                  %s319 = sadd.s32 1, %s315
                $region106: #{tds_block_forward.1} parent=99 // loop_footer_branch
                  %314 = sbr.rel target = $region102
                $region107: #{tds_block_forward.1} parent=99 // loop_exit
                  _
                %s323 = ssub.s32 16, 1
                loop: start=0, step=1, limit=1
                $region108: #{tds_block_forward.1} parent=99 // loop_pre_header
                  _
                $region109: #{tds_block_forward.1} parent=99 // loop_header
                  %s325 = sphi 0, %s329
                  %p326 = scmp.ge.s32.totalorder %s325, 1
                  %s330 = sphi %s291, %s291
                  %s331 = sphi %s286, %s286
                $region110: #{tds_block_forward.1} parent=99 // loop_header_branch
                  %328 = sbr.rel (%p326) target = $region114
                $region111: #{tds_block_forward.1} parent=99 // loop_body
                  %v332 = vld [vmem:[%s330] sm:%s323]
                  %333 = vst [vmem:[%s331] sm:%s323] %v332
                  %v334 = vld [vmem:[%s330 + $0x8] sm:%s323]
                  %335 = vst [vmem:[%s331 + $0x4] sm:%s323] %v334
                $region112: #{tds_block_forward.1} parent=99 // loop_footer
                  %s329 = sadd.s32 1, %s325
                $region113: #{tds_block_forward.1} parent=99 // loop_footer_branch
                  %324 = sbr.rel target = $region109
                $region114: #{tds_block_forward.1} parent=99 // loop_exit
                  _
              $region100: #{tds_block_forward.1} parent=84 // pred_fallthru
                _
            $region85: #{tds_block_forward.1} parent=80 // pred_fallthru
              _
            // Predicated region
            $region86: #{tds_block_forward.1} parent=80 // pred_check
              _
            $region87: #{tds_block_forward.1} parent=80 // pred_check_branch
              %297 = sbr.rel (0) target = $region89
            $region88: #{tds_block_forward.1} parent=80 // pred_region
              %s299 = ssub.s32 16, 1
              loop: start=0, step=1, limit=1
              $region90: #{tds_block_forward.1} parent=88 // loop_pre_header
                _
              $region91: #{tds_block_forward.1} parent=88 // loop_header
                %s301 = sphi 0, %s305
                %p302 = scmp.ge.s32.totalorder %s301, 1
                %s306 = sphi %s291, %s291
                %s307 = sphi %s286, %s286
              $region92: #{tds_block_forward.1} parent=88 // loop_header_branch
                %304 = sbr.rel (%p302) target = $region96
              $region93: #{tds_block_forward.1} parent=88 // loop_body
                %v308 = vld [vmem:[%s306] sm:%s299]
                %309 = vst [vmem:[%s307] sm:%s299] %v308
                %v310 = vld [vmem:[%s306 + $0x8] sm:%s299]
                %311 = vst [vmem:[%s307 + $0x4] sm:%s299] %v310
              $region94: #{tds_block_forward.1} parent=88 // loop_footer
                %s305 = sadd.s32 1, %s301
              $region95: #{tds_block_forward.1} parent=88 // loop_footer_branch
                %300 = sbr.rel target = $region91
              $region96: #{tds_block_forward.1} parent=88 // loop_exit
                _
            $region89: #{tds_block_forward.1} parent=80 // pred_fallthru
              _
          $region81: #{tds_block_forward.1} parent=76 // pred_fallthru
            _
          %336 = vnop
        $region77: #{tds_block_forward.1} parent=31 // pred_fallthru
          _
      $region32: #{tds_block_forward.1} parent=5 // pred_fallthru
        _
      %p337 = scmp.le.s32.totalorder 1, %s12
      %p338 = scmp.lt.s32.totalorder %s12, 3
      %p339 = pnand %p337, %p338
      %p340 = pneg %p339
      // Predicated region
      $region115: #{tds_block_forward.1} parent=5 // pred_check
        _
      $region116: #{tds_block_forward.1} parent=5 // pred_check_branch
        %342 = sbr.rel (%p339) target = $region118
      $region117: #{tds_block_forward.1} parent=5 // pred_region
        %s343 = ssub.s32 %s12, 1
        %s344 = sand.u32 %s39, 1
        %s345 = sand.u32 %s39, 1
        %s346 = smul.addr %s345, 8
        %s347 = scalar_lea.vmem [#allocation2], %s346
        // Predicated region
        $region119: #{tds_block_forward.1} parent=117 // pred_check
          %p348 = pneg %p52
        $region120: #{tds_block_forward.1} parent=117 // pred_check_branch
          %350 = sbr.rel (%p348) target = $region122
        $region121: #{tds_block_forward.1} parent=117 // pred_region
          _
        $region122: #{tds_block_forward.1} parent=117 // pred_fallthru
          _
        %s351 = sand.u32 %s67, 1
        %s352 = sand.u32 %s67, 1
        %s353 = smul.addr %s352, 8
        %s354 = scalar_lea.vmem [#allocation3], %s353
        // Predicated region
        $region123: #{tds_block_forward.1} parent=117 // pred_check
          %p355 = pneg %p80
        $region124: #{tds_block_forward.1} parent=117 // pred_check_branch
          %357 = sbr.rel (%p355) target = $region126
        $region125: #{tds_block_forward.1} parent=117 // pred_region
          _
        $region126: #{tds_block_forward.1} parent=117 // pred_fallthru
          _
        %s358 = sand.u32 %s39, 1
        %s359 = sand.u32 %s39, 1
        %s360 = smul.addr %s359, 8
        %s361 = scalar_lea.vmem [#allocation2], %s360
        %p362 = pneg %p52
        %p363 = pneg %p49
        %s364 = sand.u32 %s67, 1
        %s365 = sand.u32 %s67, 1
        %s366 = smul.addr %s365, 8
        %s367 = scalar_lea.vmem [#allocation3], %s366
        %p368 = pneg %p80
        %p369 = pneg %p77
        %p370 = pneg %p101
        %p371 = pneg %p98
        %p372 = pneg %p122
        %p373 = pneg %p119
        %p374 = pneg %p143
        %p375 = pneg %p140
        %p376 = pneg %p164
        %p377 = pneg %p161
        %p378 = pneg %p192
        %p379 = pneg %p189
        %s380 = sand.u32 %s179, 1
        %s381 = sand.u32 %s179, 1
        %s382 = smul.addr %s381, 16
        %s383 = scalar_lea.vmem [#allocation4], %s382
        %s384 = smul.u32 2, %s21
        %s385 = smul.u32 2, %s21
        %s386 = smul.u32 2, %s21
        %v388 = vld [vmem:[%s347] sm:$0xf]
        %v389 = vld [vmem:[%s347 + $0x4] sm:$0xf]
        %v390 = vld [vmem:[%s354] sm:$0xf]
        %v391 = vld [vmem:[%s354 + $0x4] sm:$0xf]
        %v394 = vunpack.c.l.b16 %v390
        %v395 = vunpack.c.l.b16 %v391
        %v396 = vpack.c.b16 %v394, %v394
        %v397 = vpack.c.b16 %v395, %v395
        %vm398 = vcmask 1043456
        %v401 = vsel %vm398, %v388, %v396
        %v404 = vsel %vm398, %v389, %v397
        %v405 = vld [vmem:[%s5] sm:$0xff]
        %v406 = vld [vmem:[%s2] sm:$0xf]
        %v407 = vld [vmem:[%s2 + $0x4] sm:$0xf]
        %v408 = vld [vmem:[%s2 + $0x8] sm:$0xf]
        %v409 = vld [vmem:[%s2 + $0xc] sm:$0xf]
        %v410 = vld [vmem:[%s2 + $0x10] sm:$0xf]
        %v411 = vld [vmem:[%s2 + $0x14] sm:$0xf]
        %v412 = vld [vmem:[%s2 + $0x18] sm:$0xf]
        %v413 = vld [vmem:[%s2 + $0x1c] sm:$0xf]
        %v414 = vld [vmem:[%s2 + $0x20] sm:$0xf]
        %v415 = vld [vmem:[%s2 + $0x24] sm:$0xf]
        %v416 = vld [vmem:[%s2 + $0x28] sm:$0xf]
        %v417 = vld [vmem:[%s2 + $0x2c] sm:$0xf]
        %v418 = vld [vmem:[%s2 + $0x30] sm:$0xf]
        %v419 = vld [vmem:[%s2 + $0x34] sm:$0xf]
        %v420 = vld [vmem:[%s2 + $0x38] sm:$0xf]
        %v421 = vld [vmem:[%s2 + $0x3c] sm:$0xf]
        %v424 = vunpack.c.l.b16 %v401
        %v425 = vunpack.c.h.b16 %v401
        %v426 = vunpack.c.l.b16 %v404
        %v427 = vunpack.c.h.b16 %v404
        %v428 = vpack.c.b16 %v424, %v424
        %v429 = vpack.c.b16 %v425, %v425
        %v430 = vpack.c.b16 %v426, %v426
        %v431 = vpack.c.b16 %v427, %v427
        %vm432 = vsmask.f32 3328
        %vm433 = vsmask.f32 7440
        %vm434 = vmor %vm432, %vm433
        %v436 = vshrl.u32 %v428, 16
        %v438 = vrot.slane %v436, 4
        %v439 = vshll.u32 %v428, 16
        %v441 = vrot.slane %v439, 5
        %v442 = vor.u32 %v438, %v441
        %v443 = vrot.slane %v442, 4
        %v445 = vshll.u32 %v429, 16
        %v447 = vrot.slane %v445, 5
        %v448 = vsel %vm434, %v443, %v447
        %v450 = vshrl.u32 %v430, 16
        %v452 = vrot.slane %v450, 4
        %v453 = vshll.u32 %v430, 16
        %v455 = vrot.slane %v453, 5
        %v456 = vor.u32 %v452, %v455
        %v457 = vrot.slane %v456, 4
        %v459 = vshll.u32 %v431, 16
        %v461 = vrot.slane %v459, 5
        %v462 = vsel %vm434, %v457, %v461
        %s465 = scalar_lea.vmem %s2, 64
        %v466 = vld [vmem:[%s465] sm:$0xf]
        %v467 = vld [vmem:[%s465 + $0x4] sm:$0xf]
        %v468 = vld [vmem:[%s465 + $0x8] sm:$0xf]
        %v469 = vld [vmem:[%s465 + $0xc] sm:$0xf]
        %v470 = vld [vmem:[%s465 + $0x10] sm:$0xf]
        %v471 = vld [vmem:[%s465 + $0x14] sm:$0xf]
        %v472 = vld [vmem:[%s465 + $0x18] sm:$0xf]
        %v473 = vld [vmem:[%s465 + $0x1c] sm:$0xf]
        %v474 = vld [vmem:[%s465 + $0x20] sm:$0xf]
        %v475 = vld [vmem:[%s465 + $0x24] sm:$0xf]
        %v476 = vld [vmem:[%s465 + $0x28] sm:$0xf]
        %v477 = vld [vmem:[%s465 + $0x2c] sm:$0xf]
        %v478 = vld [vmem:[%s465 + $0x30] sm:$0xf]
        %v479 = vld [vmem:[%s465 + $0x34] sm:$0xf]
        %v480 = vld [vmem:[%s465 + $0x38] sm:$0xf]
        %v481 = vld [vmem:[%s465 + $0x3c] sm:$0xf]
        %v482 = vunpack.c.l.b16 %v448
        %v483 = vunpack.c.l.b16 %v462
        %v484 = vpack.c.b16 %v483, %v482
        %v502 = vunpack.c.l.b16 %v466
        %v503 = vunpack.c.l.b16 %v467
        %v504 = vunpack.c.l.b16 %v468
        %v505 = vunpack.c.l.b16 %v469
        %v506 = vunpack.c.l.b16 %v470
        %v507 = vunpack.c.l.b16 %v471
        %v508 = vunpack.c.l.b16 %v472
        %v509 = vunpack.c.l.b16 %v473
        %v510 = vunpack.c.l.b16 %v474
        %v511 = vunpack.c.l.b16 %v475
        %v512 = vunpack.c.l.b16 %v476
        %v513 = vunpack.c.l.b16 %v477
        %v514 = vunpack.c.l.b16 %v478
        %v515 = vunpack.c.l.b16 %v479
        %v516 = vunpack.c.l.b16 %v480
        %v517 = vunpack.c.l.b16 %v481
        %v518 = vpack.c.b16 %v503, %v502
        %v519 = vpack.c.b16 %v505, %v504
        %v520 = vpack.c.b16 %v507, %v506
        %v521 = vpack.c.b16 %v509, %v508
        %v522 = vpack.c.b16 %v511, %v510
        %v523 = vpack.c.b16 %v513, %v512
        %v524 = vpack.c.b16 %v515, %v514
        %v525 = vpack.c.b16 %v517, %v516
        %534 = vmatprep.subr.bf16.mxu0 0
        %535 = vmatpush1.bf16.msra.mxu0 %v525
        %536 = vmatprep.subr.bf16.mxu0 0
        %537 = vmatpush1.bf16.msra.mxu0 %v524
        %538 = vmatprep.subr.bf16.mxu0 0
        %539 = vmatpush1.bf16.msra.mxu0 %v523
        %540 = vmatprep.subr.bf16.mxu0 0
        %541 = vmatpush1.bf16.msra.mxu0 %v522
        %542 = vmatprep.subr.bf16.mxu0 0
        %543 = vmatpush1.bf16.msra.mxu0 %v521
        %544 = vmatprep.subr.bf16.mxu0 0
        %545 = vmatpush1.bf16.msra.mxu0 %v520
        %546 = vmatprep.subr.bf16.mxu0 0
        %547 = vmatpush1.bf16.msra.mxu0 %v519
        %548 = vmatprep.subr.bf16.mxu0 0
        %549 = vmatpush1.bf16.msra.mxu0 %v518
        %550 = vmatprep.subr.bf16.mxu0 0
        %551 = vmatpush2.bf16.msra.mxu0 0
        %552 = vmatprep.subr.bf16.mxu0 0
        %553 = vmatpush2.bf16.msra.mxu0 0
        %554 = vmatprep.subr.bf16.mxu0 0
        %555 = vmatpush2.bf16.msra.mxu0 0
        %556 = vmatprep.subr.bf16.mxu0 0
        %557 = vmatpush2.bf16.msra.mxu0 0
        %558 = vmatprep.subr.bf16.mxu0 0
        %559 = vmatpush2.bf16.msra.mxu0 0
        %560 = vmatprep.subr.bf16.mxu0 0
        %561 = vmatpush2.bf16.msra.mxu0 0
        %562 = vmatprep.subr.bf16.mxu0 0
        %563 = vmatpush2.bf16.msra.mxu0 0
        %564 = vmatprep.subr.bf16.mxu0 0
        %565 = vmatpush2.bf16.msra.mxu0 0
        %566 = vmatprep.mubr.bf16.mxu0 0
        %567 = vmatmul.mubr.bf16.gmra.mxu0 %v484
        %v568 = vpop.f32.mrf.mxu0
        %v569 = vadd.f32 0.0, %v568
        %v570 = vpop.f32.mrf.mxu0
        %v571 = vpop.f32.mrf.mxu0
        %v572 = vadd.f32 0.0, %v571
        %v573 = vpop.f32.mrf.mxu0
        %574 = vdwg.mxu0
        %v575 = vpack.c.b16 %v426, %v424
        %v593 = vunpack.c.l.b16 %v406
        %v594 = vunpack.c.l.b16 %v407
        %v595 = vunpack.c.l.b16 %v408
        %v596 = vunpack.c.l.b16 %v409
        %v597 = vunpack.c.l.b16 %v410
        %v598 = vunpack.c.l.b16 %v411
        %v599 = vunpack.c.l.b16 %v412
        %v600 = vunpack.c.l.b16 %v413
        %v601 = vunpack.c.l.b16 %v414
        %v602 = vunpack.c.l.b16 %v415
        %v603 = vunpack.c.l.b16 %v416
        %v604 = vunpack.c.l.b16 %v417
        %v605 = vunpack.c.l.b16 %v418
        %v606 = vunpack.c.l.b16 %v419
        %v607 = vunpack.c.l.b16 %v420
        %v608 = vunpack.c.l.b16 %v421
        %v609 = vpack.c.b16 %v594, %v593
        %v610 = vpack.c.b16 %v596, %v595
        %v611 = vpack.c.b16 %v598, %v597
        %v612 = vpack.c.b16 %v600, %v599
        %v613 = vpack.c.b16 %v602, %v601
        %v614 = vpack.c.b16 %v604, %v603
        %v615 = vpack.c.b16 %v606, %v605
        %v616 = vpack.c.b16 %v608, %v607
        %625 = vmatprep.subr.bf16.mxu0 0
        %626 = vmatpush1.bf16.msra.mxu0 %v616
        %627 = vmatprep.subr.bf16.mxu0 0
        %628 = vmatpush1.bf16.msra.mxu0 %v615
        %629 = vmatprep.subr.bf16.mxu0 0
        %630 = vmatpush1.bf16.msra.mxu0 %v614
        %631 = vmatprep.subr.bf16.mxu0 0
        %632 = vmatpush1.bf16.msra.mxu0 %v613
        %633 = vmatprep.subr.bf16.mxu0 0
        %634 = vmatpush1.bf16.msra.mxu0 %v612
        %635 = vmatprep.subr.bf16.mxu0 0
        %636 = vmatpush1.bf16.msra.mxu0 %v611
        %637 = vmatprep.subr.bf16.mxu0 0
        %638 = vmatpush1.bf16.msra.mxu0 %v610
        %639 = vmatprep.subr.bf16.mxu0 0
        %640 = vmatpush1.bf16.msra.mxu0 %v609
        %641 = vmatprep.subr.bf16.mxu0 0
        %642 = vmatpush2.bf16.msra.mxu0 0
        %643 = vmatprep.subr.bf16.mxu0 0
        %644 = vmatpush2.bf16.msra.mxu0 0
        %645 = vmatprep.subr.bf16.mxu0 0
        %646 = vmatpush2.bf16.msra.mxu0 0
        %647 = vmatprep.subr.bf16.mxu0 0
        %648 = vmatpush2.bf16.msra.mxu0 0
        %649 = vmatprep.subr.bf16.mxu0 0
        %650 = vmatpush2.bf16.msra.mxu0 0
        %651 = vmatprep.subr.bf16.mxu0 0
        %652 = vmatpush2.bf16.msra.mxu0 0
        %653 = vmatprep.subr.bf16.mxu0 0
        %654 = vmatpush2.bf16.msra.mxu0 0
        %655 = vmatprep.subr.bf16.mxu0 0
        %656 = vmatpush2.bf16.msra.mxu0 0
        %657 = vmatprep.mubr.bf16.mxu0 0
        %658 = vmatmul.mubr.bf16.gmra.mxu0 %v575
        %v659 = vpop.f32.mrf.mxu0
        %v660 = vadd.f32 %v569, %v659
        %v661 = vpop.f32.mrf.mxu0
        %v662 = vpop.f32.mrf.mxu0
        %v663 = vadd.f32 %v572, %v662
        %v664 = vpop.f32.mrf.mxu0
        %665 = vdwg.mxu0
        %vm666 = vcmask 1042432
        %vm667 = vcmask 1046532
        %vm668 = vmor %vm666, %vm667
        %v669 = vrot.slane %v428, 5
        %v670 = vrot.slane %v669, 4
        %v671 = vrot.slane %v429, 5
        %v672 = vsel %vm668, %v670, %v671
        %v673 = vrot.slane %v430, 5
        %v674 = vrot.slane %v673, 4
        %v675 = vrot.slane %v431, 5
        %v676 = vsel %vm668, %v674, %v675
        %s677 = scalar_lea.vmem %s2, 128
        %v678 = vld [vmem:[%s677] sm:$0xf]
        %v679 = vld [vmem:[%s677 + $0x4] sm:$0xf]
        %v680 = vld [vmem:[%s677 + $0x8] sm:$0xf]
        %v681 = vld [vmem:[%s677 + $0xc] sm:$0xf]
        %v682 = vld [vmem:[%s677 + $0x10] sm:$0xf]
        %v683 = vld [vmem:[%s677 + $0x14] sm:$0xf]
        %v684 = vld [vmem:[%s677 + $0x18] sm:$0xf]
        %v685 = vld [vmem:[%s677 + $0x1c] sm:$0xf]
        %v686 = vld [vmem:[%s677 + $0x20] sm:$0xf]
        %v687 = vld [vmem:[%s677 + $0x24] sm:$0xf]
        %v688 = vld [vmem:[%s677 + $0x28] sm:$0xf]
        %v689 = vld [vmem:[%s677 + $0x2c] sm:$0xf]
        %v690 = vld [vmem:[%s677 + $0x30] sm:$0xf]
        %v691 = vld [vmem:[%s677 + $0x34] sm:$0xf]
        %v692 = vld [vmem:[%s677 + $0x38] sm:$0xf]
        %v693 = vld [vmem:[%s677 + $0x3c] sm:$0xf]
        %v694 = vunpack.c.l.b16 %v672
        %v695 = vunpack.c.l.b16 %v676
        %v696 = vpack.c.b16 %v695, %v694
        %v714 = vunpack.c.l.b16 %v678
        %v715 = vunpack.c.l.b16 %v679
        %v716 = vunpack.c.l.b16 %v680
        %v717 = vunpack.c.l.b16 %v681
        %v718 = vunpack.c.l.b16 %v682
        %v719 = vunpack.c.l.b16 %v683
        %v720 = vunpack.c.l.b16 %v684
        %v721 = vunpack.c.l.b16 %v685
        %v722 = vunpack.c.l.b16 %v686
        %v723 = vunpack.c.l.b16 %v687
        %v724 = vunpack.c.l.b16 %v688
        %v725 = vunpack.c.l.b16 %v689
        %v726 = vunpack.c.l.b16 %v690
        %v727 = vunpack.c.l.b16 %v691
        %v728 = vunpack.c.l.b16 %v692
        %v729 = vunpack.c.l.b16 %v693
        %v730 = vpack.c.b16 %v715, %v714
        %v731 = vpack.c.b16 %v717, %v716
        %v732 = vpack.c.b16 %v719, %v718
        %v733 = vpack.c.b16 %v721, %v720
        %v734 = vpack.c.b16 %v723, %v722
        %v735 = vpack.c.b16 %v725, %v724
        %v736 = vpack.c.b16 %v727, %v726
        %v737 = vpack.c.b16 %v729, %v728
        %746 = vmatprep.subr.bf16.mxu0 0
        %747 = vmatpush1.bf16.msra.mxu0 %v737
        %748 = vmatprep.subr.bf16.mxu0 0
        %749 = vmatpush1.bf16.msra.mxu0 %v736
        %750 = vmatprep.subr.bf16.mxu0 0
        %751 = vmatpush1.bf16.msra.mxu0 %v735
        %752 = vmatprep.subr.bf16.mxu0 0
        %753 = vmatpush1.bf16.msra.mxu0 %v734
        %754 = vmatprep.subr.bf16.mxu0 0
        %755 = vmatpush1.bf16.msra.mxu0 %v733
        %756 = vmatprep.subr.bf16.mxu0 0
        %757 = vmatpush1.bf16.msra.mxu0 %v732
        %758 = vmatprep.subr.bf16.mxu0 0
        %759 = vmatpush1.bf16.msra.mxu0 %v731
        %760 = vmatprep.subr.bf16.mxu0 0
        %761 = vmatpush1.bf16.msra.mxu0 %v730
        %762 = vmatprep.subr.bf16.mxu0 0
        %763 = vmatpush2.bf16.msra.mxu0 0
        %764 = vmatprep.subr.bf16.mxu0 0
        %765 = vmatpush2.bf16.msra.mxu0 0
        %766 = vmatprep.subr.bf16.mxu0 0
        %767 = vmatpush2.bf16.msra.mxu0 0
        %768 = vmatprep.subr.bf16.mxu0 0
        %769 = vmatpush2.bf16.msra.mxu0 0
        %770 = vmatprep.subr.bf16.mxu0 0
        %771 = vmatpush2.bf16.msra.mxu0 0
        %772 = vmatprep.subr.bf16.mxu0 0
        %773 = vmatpush2.bf16.msra.mxu0 0
        %774 = vmatprep.subr.bf16.mxu0 0
        %775 = vmatpush2.bf16.msra.mxu0 0
        %776 = vmatprep.subr.bf16.mxu0 0
        %777 = vmatpush2.bf16.msra.mxu0 0
        %778 = vmatprep.mubr.bf16.mxu0 0
        %779 = vmatmul.mubr.bf16.gmra.mxu0 %v696
        %v780 = vpop.f32.mrf.mxu0
        %v781 = vadd.f32 0.0, %v780
        %v782 = vpop.f32.mrf.mxu0
        %v783 = vpop.f32.mrf.mxu0
        %v784 = vadd.f32 0.0, %v783
        %v785 = vpop.f32.mrf.mxu0
        %786 = vdwg.mxu0
        %v787 = vadd.f32 %v660, %v781
        %v788 = vadd.f32 %v663, %v784
        %v789 = vlaneseq
        %v790 = vshrl.u32 %v789, 7
        %v791 = vsub.s32 0, %v790
        %v792 = vrot.slane %v405, %v791
        %v793 = vadd.f32 %v787, %v792
        %v794 = vadd.f32 %v788, %v792
        %v795 = vunpack.c.l.bf16 %v448
        %v796 = vunpack.c.l.bf16 %v462
        %v797 = vmax.f32 %v793, 0.0
        %v798 = vmax.f32 %v794, 0.0
        %v799 = vadd.f32 %v797, %v795
        %v800 = vadd.f32 %v798, %v796
        %v801 = vlaneseq
        %v802 = vshrl.u32 %v801, 7
        %v803 = vsub.s32 7, %v802
        %v804 = vrot.slane %v405, %v803
        %v805 = vmul.f32 %v799, %v804
        %v806 = vmul.f32 %v800, %v804
        %807 = vadd.xlane.f32.xlu0 %v805
        %v808 = vpop.xlane.xlu0 %807
        %809 = vadd.xlane.f32.xlu0 %v806
        %v810 = vpop.xlane.xlu0 %809
        %v811 = vmul.f32 %v808, 0.03125
        %v812 = vmul.f32 %v810, 0.03125
        %v813 = vsub.f32 %v799, %v811
        %v814 = vsub.f32 %v800, %v812
        %v815 = vmul.f32 %v813, %v804
        %v816 = vmul.f32 %v814, %v804
        %v817 = vmul.f32 %v815, %v815
        %v818 = vmul.f32 %v816, %v816
        %819 = vadd.xlane.f32.xlu0 %v817
        %v820 = vpop.xlane.xlu0 %819
        %821 = vadd.xlane.f32.xlu0 %v818
        %v822 = vpop.xlane.xlu0 %821
        %v823 = vmul.f32 %v820, 0.03125
        %v824 = vmul.f32 %v822, 0.03125
        %v825 = vadd.f32 %v823, 1e-05
        %v826 = vadd.f32 %v824, 1e-05
        %v827 = vrsqrt.pop %v825
        %v828 = vrsqrt.pop %v826
        %v829 = vmul.f32 %v815, %v827
        %v830 = vmul.f32 %v816, %v828
        %v831 = vlaneseq
        %v832 = vshrl.u32 %v831, 7
        %v833 = vsub.s32 1, %v832
        %v834 = vrot.slane %v405, %v833
        %v835 = vmul.f32 %v829, %v834
        %v836 = vmul.f32 %v830, %v834
        %v837 = vlaneseq
        %v838 = vshrl.u32 %v837, 7
        %v839 = vsub.s32 2, %v838
        %v840 = vrot.slane %v405, %v839
        %v841 = vadd.f32 %v835, %v840
        %v842 = vadd.f32 %v836, %v840
        %v843 = vpack.c.bf16 %v842, %v841
        %v844 = vld [vmem:[%s3] sm:$0xf]
        %v845 = vld [vmem:[%s3 + $0x4] sm:$0xf]
        %v846 = vld [vmem:[%s3 + $0x8] sm:$0xf]
        %v847 = vld [vmem:[%s3 + $0xc] sm:$0xf]
        %v848 = vld [vmem:[%s3 + $0x10] sm:$0xf]
        %v849 = vld [vmem:[%s3 + $0x14] sm:$0xf]
        %v850 = vld [vmem:[%s3 + $0x18] sm:$0xf]
        %v851 = vld [vmem:[%s3 + $0x1c] sm:$0xf]
        %v852 = vld [vmem:[%s3 + $0x20] sm:$0xf]
        %v853 = vld [vmem:[%s3 + $0x24] sm:$0xf]
        %v854 = vld [vmem:[%s3 + $0x28] sm:$0xf]
        %v855 = vld [vmem:[%s3 + $0x2c] sm:$0xf]
        %v856 = vld [vmem:[%s3 + $0x30] sm:$0xf]
        %v857 = vld [vmem:[%s3 + $0x34] sm:$0xf]
        %v858 = vld [vmem:[%s3 + $0x38] sm:$0xf]
        %v859 = vld [vmem:[%s3 + $0x3c] sm:$0xf]
        %v860 = vlaneseq
        %v861 = vshrl.u32 %v860, 7
        %v862 = vsub.s32 3, %v861
        %v863 = vrot.slane %v405, %v862
        %v880 = vunpack.c.l.b16 %v844
        %v881 = vunpack.c.l.b16 %v845
        %v882 = vunpack.c.l.b16 %v846
        %v883 = vunpack.c.l.b16 %v847
        %v884 = vunpack.c.l.b16 %v848
        %v885 = vunpack.c.l.b16 %v849
        %v886 = vunpack.c.l.b16 %v850
        %v887 = vunpack.c.l.b16 %v851
        %v888 = vunpack.c.l.b16 %v852
        %v889 = vunpack.c.l.b16 %v853
        %v890 = vunpack.c.l.b16 %v854
        %v891 = vunpack.c.l.b16 %v855
        %v892 = vunpack.c.l.b16 %v856
        %v893 = vunpack.c.l.b16 %v857
        %v894 = vunpack.c.l.b16 %v858
        %v895 = vunpack.c.l.b16 %v859
        %v896 = vpack.c.b16 %v881, %v880
        %v897 = vpack.c.b16 %v883, %v882
        %v898 = vpack.c.b16 %v885, %v884
        %v899 = vpack.c.b16 %v887, %v886
        %v900 = vpack.c.b16 %v889, %v888
        %v901 = vpack.c.b16 %v891, %v890
        %v902 = vpack.c.b16 %v893, %v892
        %v903 = vpack.c.b16 %v895, %v894
        %912 = vmatprep.subr.bf16.mxu0 0
        %913 = vmatpush1.bf16.msra.mxu0 %v903
        %914 = vmatprep.subr.bf16.mxu0 0
        %915 = vmatpush1.bf16.msra.mxu0 %v902
        %916 = vmatprep.subr.bf16.mxu0 0
        %917 = vmatpush1.bf16.msra.mxu0 %v901
        %918 = vmatprep.subr.bf16.mxu0 0
        %919 = vmatpush1.bf16.msra.mxu0 %v900
        %920 = vmatprep.subr.bf16.mxu0 0
        %921 = vmatpush1.bf16.msra.mxu0 %v899
        %922 = vmatprep.subr.bf16.mxu0 0
        %923 = vmatpush1.bf16.msra.mxu0 %v898
        %924 = vmatprep.subr.bf16.mxu0 0
        %925 = vmatpush1.bf16.msra.mxu0 %v897
        %926 = vmatprep.subr.bf16.mxu0 0
        %927 = vmatpush1.bf16.msra.mxu0 %v896
        %928 = vmatprep.subr.bf16.mxu0 0
        %929 = vmatpush2.bf16.msra.mxu0 0
        %930 = vmatprep.subr.bf16.mxu0 0
        %931 = vmatpush2.bf16.msra.mxu0 0
        %932 = vmatprep.subr.bf16.mxu0 0
        %933 = vmatpush2.bf16.msra.mxu0 0
        %934 = vmatprep.subr.bf16.mxu0 0
        %935 = vmatpush2.bf16.msra.mxu0 0
        %936 = vmatprep.subr.bf16.mxu0 0
        %937 = vmatpush2.bf16.msra.mxu0 0
        %938 = vmatprep.subr.bf16.mxu0 0
        %939 = vmatpush2.bf16.msra.mxu0 0
        %940 = vmatprep.subr.bf16.mxu0 0
        %941 = vmatpush2.bf16.msra.mxu0 0
        %942 = vmatprep.subr.bf16.mxu0 0
        %943 = vmatpush2.bf16.msra.mxu0 0
        %944 = vmatprep.mubr.bf16.mxu0 0
        %945 = vmatmul.mubr.bf16.gmra.mxu0 %v843
        %v946 = vpop.f32.mrf.mxu0
        %v947 = vadd.f32 %v863, %v946
        %v948 = vpop.f32.mrf.mxu0
        %v949 = vpop.f32.mrf.mxu0
        %v950 = vadd.f32 %v863, %v949
        %v951 = vpop.f32.mrf.mxu0
        %952 = vdwg.mxu0
        %v953 = vmax.f32 %v947, 0.0
        %v954 = vmax.f32 %v950, 0.0
        %v955 = vpack.c.bf16 %v954, %v953
        %v956 = vld [vmem:[%s4] sm:$0xf]
        %v957 = vld [vmem:[%s4 + $0x4] sm:$0xf]
        %v958 = vld [vmem:[%s4 + $0x8] sm:$0xf]
        %v959 = vld [vmem:[%s4 + $0xc] sm:$0xf]
        %v960 = vld [vmem:[%s4 + $0x10] sm:$0xf]
        %v961 = vld [vmem:[%s4 + $0x14] sm:$0xf]
        %v962 = vld [vmem:[%s4 + $0x18] sm:$0xf]
        %v963 = vld [vmem:[%s4 + $0x1c] sm:$0xf]
        %v964 = vld [vmem:[%s4 + $0x20] sm:$0xf]
        %v965 = vld [vmem:[%s4 + $0x24] sm:$0xf]
        %v966 = vld [vmem:[%s4 + $0x28] sm:$0xf]
        %v967 = vld [vmem:[%s4 + $0x2c] sm:$0xf]
        %v968 = vld [vmem:[%s4 + $0x30] sm:$0xf]
        %v969 = vld [vmem:[%s4 + $0x34] sm:$0xf]
        %v970 = vld [vmem:[%s4 + $0x38] sm:$0xf]
        %v971 = vld [vmem:[%s4 + $0x3c] sm:$0xf]
        %v972 = vlaneseq
        %v973 = vshrl.u32 %v972, 7
        %v974 = vsub.s32 4, %v973
        %v975 = vrot.slane %v405, %v974
        %v992 = vunpack.c.l.b16 %v956
        %v993 = vunpack.c.l.b16 %v957
        %v994 = vunpack.c.l.b16 %v958
        %v995 = vunpack.c.l.b16 %v959
        %v996 = vunpack.c.l.b16 %v960
        %v997 = vunpack.c.l.b16 %v961
        %v998 = vunpack.c.l.b16 %v962
        %v999 = vunpack.c.l.b16 %v963
        %v1000 = vunpack.c.l.b16 %v964
        %v1001 = vunpack.c.l.b16 %v965
        %v1002 = vunpack.c.l.b16 %v966
        %v1003 = vunpack.c.l.b16 %v967
        %v1004 = vunpack.c.l.b16 %v968
        %v1005 = vunpack.c.l.b16 %v969
        %v1006 = vunpack.c.l.b16 %v970
        %v1007 = vunpack.c.l.b16 %v971
        %v1008 = vpack.c.b16 %v993, %v992
        %v1009 = vpack.c.b16 %v995, %v994
        %v1010 = vpack.c.b16 %v997, %v996
        %v1011 = vpack.c.b16 %v999, %v998
        %v1012 = vpack.c.b16 %v1001, %v1000
        %v1013 = vpack.c.b16 %v1003, %v1002
        %v1014 = vpack.c.b16 %v1005, %v1004
        %v1015 = vpack.c.b16 %v1007, %v1006
        %1024 = vmatprep.subr.bf16.mxu0 0
        %1025 = vmatpush1.bf16.msra.mxu0 %v1015
        %1026 = vmatprep.subr.bf16.mxu0 0
        %1027 = vmatpush1.bf16.msra.mxu0 %v1014
        %1028 = vmatprep.subr.bf16.mxu0 0
        %1029 = vmatpush1.bf16.msra.mxu0 %v1013
        %1030 = vmatprep.subr.bf16.mxu0 0
        %1031 = vmatpush1.bf16.msra.mxu0 %v1012
        %1032 = vmatprep.subr.bf16.mxu0 0
        %1033 = vmatpush1.bf16.msra.mxu0 %v1011
        %1034 = vmatprep.subr.bf16.mxu0 0
        %1035 = vmatpush1.bf16.msra.mxu0 %v1010
        %1036 = vmatprep.subr.bf16.mxu0 0
        %1037 = vmatpush1.bf16.msra.mxu0 %v1009
        %1038 = vmatprep.subr.bf16.mxu0 0
        %1039 = vmatpush1.bf16.msra.mxu0 %v1008
        %1040 = vmatprep.subr.bf16.mxu0 0
        %1041 = vmatpush2.bf16.msra.mxu0 0
        %1042 = vmatprep.subr.bf16.mxu0 0
        %1043 = vmatpush2.bf16.msra.mxu0 0
        %1044 = vmatprep.subr.bf16.mxu0 0
        %1045 = vmatpush2.bf16.msra.mxu0 0
        %1046 = vmatprep.subr.bf16.mxu0 0
        %1047 = vmatpush2.bf16.msra.mxu0 0
        %1048 = vmatprep.subr.bf16.mxu0 0
        %1049 = vmatpush2.bf16.msra.mxu0 0
        %1050 = vmatprep.subr.bf16.mxu0 0
        %1051 = vmatpush2.bf16.msra.mxu0 0
        %1052 = vmatprep.subr.bf16.mxu0 0
        %1053 = vmatpush2.bf16.msra.mxu0 0
        %1054 = vmatprep.subr.bf16.mxu0 0
        %1055 = vmatpush2.bf16.msra.mxu0 0
        %1056 = vmatprep.mubr.bf16.mxu0 0
        %1057 = vmatmul.mubr.bf16.gmra.mxu0 %v955
        %v1058 = vpop.f32.mrf.mxu0
        %v1059 = vadd.f32 %v975, %v1058
        %v1060 = vpop.f32.mrf.mxu0
        %v1061 = vpop.f32.mrf.mxu0
        %v1062 = vadd.f32 %v975, %v1061
        %v1063 = vpop.f32.mrf.mxu0
        %1064 = vdwg.mxu0
        %v1065 = vadd.f32 %v1059, %v841
        %v1066 = vadd.f32 %v1062, %v842
        %v1067 = vmul.f32 %v1065, %v804
        %v1068 = vmul.f32 %v1066, %v804
        %1069 = vadd.xlane.f32.xlu0 %v1067
        %v1070 = vpop.xlane.xlu0 %1069
        %1071 = vadd.xlane.f32.xlu0 %v1068
        %v1072 = vpop.xlane.xlu0 %1071
        %v1073 = vmul.f32 %v1070, 0.03125
        %v1074 = vmul.f32 %v1072, 0.03125
        %v1075 = vsub.f32 %v1065, %v1073
        %v1076 = vsub.f32 %v1066, %v1074
        %v1077 = vmul.f32 %v1075, %v804
        %v1078 = vmul.f32 %v1076, %v804
        %v1079 = vmul.f32 %v1077, %v1077
        %v1080 = vmul.f32 %v1078, %v1078
        %1081 = vadd.xlane.f32.xlu0 %v1079
        %v1082 = vpop.xlane.xlu0 %1081
        %1083 = vadd.xlane.f32.xlu0 %v1080
        %v1084 = vpop.xlane.xlu0 %1083
        %v1085 = vmul.f32 %v1082, 0.03125
        %v1086 = vmul.f32 %v1084, 0.03125
        %v1087 = vadd.f32 %v1085, 1e-05
        %v1088 = vadd.f32 %v1086, 1e-05
        %v1089 = vrsqrt.pop %v1087
        %v1090 = vrsqrt.pop %v1088
        %v1091 = vmul.f32 %v1077, %v1089
        %v1092 = vmul.f32 %v1078, %v1090
        %v1093 = vlaneseq
        %v1094 = vshrl.u32 %v1093, 7
        %v1095 = vsub.s32 5, %v1094
        %v1096 = vrot.slane %v405, %v1095
        %v1097 = vmul.f32 %v1091, %v1096
        %v1098 = vmul.f32 %v1092, %v1096
        %v1099 = vlaneseq
        %v1100 = vshrl.u32 %v1099, 7
        %v1101 = vsub.s32 6, %v1100
        %v1102 = vrot.slane %v405, %v1101
        %v1103 = vadd.f32 %v1097, %v1102
        %v1104 = vadd.f32 %v1098, %v1102
        %1105 = vst [vmem:[%s383] sm:$0xff] %v1103
        %1106 = vst [vmem:[%s383 + $0x8] sm:$0xff] %v1104
        %s1107 = sand.u32 %s179, 1
        %s1108 = sand.u32 %s179, 1
        %s1109 = smul.addr %s1108, 16
        %s1110 = scalar_lea.vmem [#allocation4], %s1109
        // Predicated region
        $region127: #{tds_block_forward.1} parent=117 // pred_check
          %p1111 = pneg %p189
        $region128: #{tds_block_forward.1} parent=117 // pred_check_branch
          %1113 = sbr.rel (%p1111) target = $region130
        $region129: #{tds_block_forward.1} parent=117 // pred_region
          %s1114 = smul.u32 2, %s21
          %s1115 = smul.addr %s1114, 2
          %s1116 = sadd.s32 %s22, %s1115
          %s1117 = smul.addr %s1116, 8
          %s1118 = scalar_lea.vmem %s6, %s1117
          // Predicated region
          $region131: #{tds_block_forward.1} parent=129 // pred_check
            _
          $region132: #{tds_block_forward.1} parent=129 // pred_check_branch
            %1120 = sbr.rel (0) target = $region134
          $region133: #{tds_block_forward.1} parent=129 // pred_region
            // Predicated region
            $region135: #{tds_block_forward.1} parent=133 // pred_check
              _
            $region136: #{tds_block_forward.1} parent=133 // pred_check_branch
              %1122 = sbr.rel (0) target = $region138
            $region137: #{tds_block_forward.1} parent=133 // pred_region
              // Predicated region
              $region150: #{tds_block_forward.1} parent=137 // pred_check
                _
              $region151: #{tds_block_forward.1} parent=137 // pred_check_branch
                %1140 = sbr.rel (0) target = $region153
              $region152: #{tds_block_forward.1} parent=137 // pred_region
                loop: start=0, step=1, limit=1
                $region154: #{tds_block_forward.1} parent=152 // loop_pre_header
                  _
                $region155: #{tds_block_forward.1} parent=152 // loop_header
                  %s1142 = sphi 0, %s1146
                  %p1143 = scmp.ge.s32.totalorder %s1142, 1
                  %s1147 = sphi %s1110, %s1110
                  %s1148 = sphi %s1118, %s1118
                $region156: #{tds_block_forward.1} parent=152 // loop_header_branch
                  %1145 = sbr.rel (%p1143) target = $region160
                $region157: #{tds_block_forward.1} parent=152 // loop_body
                  %v1149 = vld [vmem:[%s1147] sm:$0xff]
                  %1150 = vst [vmem:[%s1148] sm:$0xff] %v1149
                  %v1151 = vld [vmem:[%s1147 + $0x8] sm:$0xff]
                  %1152 = vst [vmem:[%s1148 + $0x10] sm:$0xff] %v1151
                $region158: #{tds_block_forward.1} parent=152 // loop_footer
                  %s1146 = sadd.s32 1, %s1142
                $region159: #{tds_block_forward.1} parent=152 // loop_footer_branch
                  %1141 = sbr.rel target = $region155
                $region160: #{tds_block_forward.1} parent=152 // loop_exit
                  _
              $region153: #{tds_block_forward.1} parent=137 // pred_fallthru
                _
              // Predicated region
              $region161: #{tds_block_forward.1} parent=137 // pred_check
                _
              $region162: #{tds_block_forward.1} parent=137 // pred_check_branch
                %1154 = sbr.rel target = $region164
              $region163: #{tds_block_forward.1} parent=137 // pred_region
                _
              $region164: #{tds_block_forward.1} parent=137 // pred_fallthru
                _
            $region138: #{tds_block_forward.1} parent=133 // pred_fallthru
              _
            // Predicated region
            $region139: #{tds_block_forward.1} parent=133 // pred_check
              _
            $region140: #{tds_block_forward.1} parent=133 // pred_check_branch
              %1124 = sbr.rel target = $region142
            $region141: #{tds_block_forward.1} parent=133 // pred_region
              %s1126 = ssub.s32 256, 1
              loop: start=0, step=1, limit=1
              $region143: #{tds_block_forward.1} parent=141 // loop_pre_header
                _
              $region144: #{tds_block_forward.1} parent=141 // loop_header
                %s1128 = sphi 0, %s1132
                %p1129 = scmp.ge.s32.totalorder %s1128, 1
                %s1133 = sphi %s1110, %s1110
                %s1134 = sphi %s1118, %s1118
              $region145: #{tds_block_forward.1} parent=141 // loop_header_branch
                %1131 = sbr.rel (%p1129) target = $region149
              $region146: #{tds_block_forward.1} parent=141 // loop_body
                %v1135 = vld [vmem:[%s1133] sm:%s1126]
                %1136 = vst [vmem:[%s1134] sm:%s1126] %v1135
                %v1137 = vld [vmem:[%s1133 + $0x8] sm:%s1126]
                %1138 = vst [vmem:[%s1134 + $0x10] sm:%s1126] %v1137
              $region147: #{tds_block_forward.1} parent=141 // loop_footer
                %s1132 = sadd.s32 1, %s1128
              $region148: #{tds_block_forward.1} parent=141 // loop_footer_branch
                %1127 = sbr.rel target = $region144
              $region149: #{tds_block_forward.1} parent=141 // loop_exit
                _
            $region142: #{tds_block_forward.1} parent=133 // pred_fallthru
              _
          $region134: #{tds_block_forward.1} parent=129 // pred_fallthru
            _
          %1155 = vnop
        $region130: #{tds_block_forward.1} parent=117 // pred_fallthru
          _
      $region118: #{tds_block_forward.1} parent=5 // pred_fallthru
        _
      %p1156 = scmp.le.s32.totalorder 2, %s12
      // Predicated region
      $region165: #{tds_block_forward.1} parent=5 // pred_check
        %p1157 = pneg %p1156
      $region166: #{tds_block_forward.1} parent=5 // pred_check_branch
        %1159 = sbr.rel (%p1157) target = $region168
      $region167: #{tds_block_forward.1} parent=5 // pred_region
        %s1160 = ssub.s32 %s12, 2
        // Predicated region
        $region169: #{tds_block_forward.1} parent=167 // pred_check
          %p1161 = pneg %p195
        $region170: #{tds_block_forward.1} parent=167 // pred_check_branch
          %1163 = sbr.rel (%p1161) target = $region172
        $region171: #{tds_block_forward.1} parent=167 // pred_region
          %s1164 = sand.u32 %s180, 1
          %s1165 = sand.u32 %s180, 1
          %s1166 = smul.addr %s1165, 16
          %s1167 = scalar_lea.vmem [#allocation4], %s1166
        $region172: #{tds_block_forward.1} parent=167 // pred_fallthru
          _
      $region168: #{tds_block_forward.1} parent=5 // pred_fallthru
        _
    $region6: #{tds_block_forward.1} parent=1 // loop_footer
      %s16 = sadd.s32 1, %s12
    $region7: #{tds_block_forward.1} parent=1 // loop_footer_branch
      %11 = sbr.rel target = $region3
    $region8: #{tds_block_forward.1} parent=1 // loop_exit
      _

</llo_original>
